<compile_context>
chip_gen: v5e
topology: v5e:2x2
jax: 0.10.0
libtpu: 0.0.40
codegen_flags: <defaults>
</compile_context>

<pallas_src>
import jax
import jax.numpy as jnp
from jax.experimental import pallas as pl
from jax.experimental.pallas import tpu as pltpu

KERNEL_WIDTHS = (2, 3, 4, 5, 6, 7)
NUM_FILTERS = 15
NEG_MASK = -1e30          # "minus infinity" for masked max-pool positions
TARGET_ROWS = 1024        # conv rows (nb * L_pad) per grid step; conv f32 ~= 2 MiB


def _charcnn_kernel(x_ref, w_ref, b_ref, mask_ref, o_ref):
    """x_ref:    [nb*L_pad, K_pad] bf16  (pre-built im2col windows, all widths share it)
       w_ref:    [K_pad, Fb]       bf16  (packed weights; zero rows for shifts >= k per width)
       b_ref:    [1, Fb]           f32
       mask_ref: [L_pad, Fb]       bf16  (0 at valid positions, -1e30 at invalid tails)
       o_ref:    [nb, Fb]          f32
    """
    l_pad, fb = mask_ref.shape
    nb = x_ref.shape[0] // l_pad

    # One fused MXU matmul for all widths and all samples in this block (f32 accumulate).
    conv = jnp.dot(x_ref[...], w_ref[...],
                   preferred_element_type=jnp.float32)          # [nb*L_pad, Fb]

    # Vectorized masked global max-pool over positions (single strided reduce, no per-sample
    # slices); bias + sigmoid are applied after the pool (exact, sigmoid monotone).
    conv = conv.reshape(nb, l_pad, fb)
    mask = mask_ref[...].astype(jnp.float32)[None]               # [1, L_pad, Fb]
    pooled = jnp.max(conv + mask, axis=1)                        # [nb, Fb]

    z = pooled + b_ref[...]
    o_ref[...] = pl.reciprocal(1.0 + jnp.exp(-z), approx=True).astype(o_ref.dtype)


def pack_charcnn_params(weights, biases, max_c_length,
                        kernel_widths=KERNEL_WIDTHS, num_filters=NUM_FILTERS):
    """One-time weight/bias/mask packing (hoisted out of the per-call path).

    weights[i]: [F_k, k, E], biases[i]: [F_k].
    Returns (w_pack [K_pad, F_pad] bf16, b_pack [1, F_pad] f32,
             mask [L_pad, F_pad] bf16, total_f)."""
    E = weights[0].shape[-1]
    L = max_c_length
    k_max = max(kernel_widths)
    # Mirrors the PyTorch module, which errors when a conv width exceeds the input length.
    assert L >= k_max, f"max_c_length={L} must be >= widest filter {k_max}"

    total_f = sum(num_filters * k for k in kernel_widths)
    f_pad = pl.cdiv(total_f, 128) * 128           # lane-dense output width (405 -> 512)
    ke = k_max * E
    ke_pad = pl.cdiv(ke, 16) * 16                 # bf16-friendly contraction dim (56 -> 64)
    l_pad = pl.cdiv(L, 8) * 8                     # sublane-aligned position count

    w_pack = jnp.zeros((ke_pad, f_pad), jnp.float32)
    b_pack = jnp.zeros((1, f_pad), jnp.float32)
    mask = jnp.zeros((l_pad, f_pad), jnp.float32)

    off = 0
    pos = jnp.arange(l_pad)[:, None]
    for k, w, b in zip(kernel_widths, weights, biases):
        f_k = num_filters * k
        # Shift-major, matmul-ready: row i*E+e of this column block == w[f, i, e].
        # Rows >= k*E stay zero so wider shifts contribute nothing to this width.
        w_r = jnp.transpose(w, (1, 2, 0)).reshape(k * E, f_k).astype(jnp.float32)
        w_pack = w_pack.at[:k * E, off:off + f_k].set(w_r)
        b_pack = b_pack.at[0, off:off + f_k].set(b.astype(jnp.float32))
        # Valid conv positions are t in [0, L-k]; everything else (tails + L padding) is -inf.
        col_mask = jnp.where(pos <= L - k, 0.0, NEG_MASK)
        mask = mask.at[:, off:off + f_k].set(jnp.broadcast_to(col_mask, (l_pad, f_k)))
        off += f_k
    # Padded columns [total_f, f_pad) stay unmasked with zero weights -> sigmoid(0)=0.5; they
    # are sliced off in the wrapper and must not be consumed directly.

    return (w_pack.astype(jnp.bfloat16), b_pack,
            mask.astype(jnp.bfloat16), total_f)


def _build_x_win(x, l_pad, k_max, ke_pad, n_pad):
    """im2col in the wrapper: x [N,1,L,E] -> x_win [N_pad*L_pad, K_pad] bf16.
    Windows that run past L (or into batch padding) are zero; the kernel's -inf mask removes
    those positions before the max, so the zeros never affect the result."""
    N, C, L, E = x.shape
    x3 = x[:, 0, :, :]                                           # [N, L, E]
    if n_pad > N:
        x3 = jnp.pad(x3, ((0, n_pad - N), (0, 0), (0, 0)))
    x_ext = jnp.pad(x3, ((0, 0), (0, l_pad + k_max - 1 - L), (0, 0)))
    cols = [x_ext[:, i:i + l_pad, :] for i in range(k_max)]      # each [N_pad, L_pad, E]
    x_win = jnp.concatenate(cols, axis=-1)                       # [N_pad, L_pad, k_max*E]
    if ke_pad > k_max * E:
        x_win = jnp.pad(x_win, ((0, 0), (0, 0), (0, ke_pad - k_max * E)))
    return x_win.reshape(n_pad * l_pad, ke_pad).astype(jnp.bfloat16)


def charcnn_forward(x, w_pack, b_pack, mask, total_f, *, target_rows=TARGET_ROWS):
    """x: [N, 1, L, E] (NCHW, C=1). Returns [N, total_f, 1] (matches the PyTorch module)."""
    N, C, L, E = x.shape
    assert C == 1, "CharCNN uses a single input channel"
    l_pad, f_pad = mask.shape
    ke_pad = w_pack.shape[0]
    k_max = max(KERNEL_WIDTHS)

    # ---- batch blocking: target ~1024 conv rows per step; never degrade to nb=1 on awkward N.
    nb = max(1, target_rows // l_pad)
    if nb >= N:
        nb, n_pad = N, N
    else:
        nb = max(8, (nb // 8) * 8)            # keep the output block sublane-aligned
        if nb >= N:
            nb, n_pad = N, N
        else:
            n_pad = pl.cdiv(N, nb) * nb       # pad batch instead of shrinking the block

    batch_blocks = n_pad // nb
    # If only one batch block, split the 512-wide filter axis 2x256 so both v7x TCs get work.
    f_blocks = 2 if (batch_blocks < 2 and f_pad % 256 == 0) else 1
    fb = f_pad // f_blocks

    x_win = _build_x_win(x, l_pad, k_max, ke_pad, n_pad)         # [N_pad*L_pad, K_pad] bf16

    out_pad = pl.pallas_call(
        _charcnn_kernel,
        out_shape=jax.ShapeDtypeStruct((n_pad, f_pad), jnp.float32),
        grid=(batch_blocks, f_blocks),
        in_specs=[
            pl.BlockSpec((nb * l_pad, ke_pad), lambda b, f: (b, 0)),   # im2col batch block
            pl.BlockSpec((ke_pad, fb), lambda b, f: (0, f)),           # packed weights
            pl.BlockSpec((1, fb), lambda b, f: (0, f)),                # packed bias
            pl.BlockSpec((l_pad, fb), lambda b, f: (0, f)),            # position-validity mask
        ],
        out_specs=pl.BlockSpec((nb, fb), lambda b, f: (b, f)),
        compiler_params=pltpu.CompilerParams(
            dimension_semantics=("parallel", "parallel")),
    )(x_win, w_pack, b_pack, mask)

    return out_pad[:N, :total_f, None]                           # [N, sum_k F_k, 1]


def charcnn_reference(x, weights, biases,
                      kernel_widths=KERNEL_WIDTHS, num_filters=NUM_FILTERS):
    """Pure-JAX reference of the PyTorch forward (for the correctness check)."""
    N, C, L, E = x.shape
    x3 = x[:, 0, :, :]
    outs = []
    for k, w, b in zip(kernel_widths, weights, biases):
        l_out = L - k + 1
        windows = jnp.stack([x3[:, i:i + l_out, :] for i in range(k)], axis=2)  # [N, L_out, k, E]
        conv = jnp.einsum("ntke,fke->ntf", windows, w, precision="highest") + b[None, None, :]
        act = jax.nn.sigmoid(conv)
        outs.append(jnp.max(act, axis=1))                                        # [N, F_k]
    return jnp.concatenate(outs, axis=1)[:, :, None]


if __name__ == "__main__":
    # Small deterministic example: batch(*temporal)=2, max_c_length=16, embedding_dim=8.
    N, L, E = 2, 16, 8
    key = jax.random.PRNGKey(0)
    keys = jax.random.split(key, 1 + 2 * len(KERNEL_WIDTHS))

    x = jax.random.normal(keys[0], (N, 1, L, E), dtype=jnp.float32)

    weights, biases = [], []
    for i, k in enumerate(KERNEL_WIDTHS):
        f_k = NUM_FILTERS * k
        bound = 1.0 / (1 * k * E) ** 0.5            # Conv2d default init bound
        w = jax.random.uniform(keys[1 + i], (f_k, k, E), jnp.float32, -bound, bound)
        b = jax.random.uniform(keys[1 + len(KERNEL_WIDTHS) + i], (f_k,), jnp.float32, -bound, bound)
        weights.append(w)
        biases.append(b)

    # One-time packing (constant under jit / reused across calls).
    w_pack, b_pack, mask, total_f = pack_charcnn_params(weights, biases, L)

    out = charcnn_forward(x, w_pack, b_pack, mask, total_f)
    out = jax.block_until_ready(out)

    assert out.shape == (N, total_f, 1), out.shape      # total_f == 405

    ref = charcnn_reference(x, weights, biases)
    max_err = float(jnp.max(jnp.abs(out - ref)))
    assert jnp.allclose(out, ref, atol=2e-2, rtol=2e-2), max_err

    print("KERNEL_OK")
</pallas_src>

<mosaic_0001>
module attributes {stable_mosaic.version = 11 : i64} {
  func.func @_charcnn_kernel(%arg0: i32, %arg1: i32, %arg2: memref<32x64xbf16, #tpu.memory_space<vmem>>, %arg3: memref<64x256xbf16, #tpu.memory_space<vmem>>, %arg4: memref<1x256xf32, #tpu.memory_space<vmem>>, %arg5: memref<16x256xbf16, #tpu.memory_space<vmem>>, %arg6: memref<2x256xf32, #tpu.memory_space<vmem>>) attributes {dimension_semantics = [#tpu.dimension_semantics<parallel>, #tpu.dimension_semantics<parallel>], iteration_bounds = array<i64: 1, 2>, scalar_prefetch = 0 : i64, scratch_operands = 0 : i64, tpu.core_type = #tpu.core_type<tc>, window_params = [{transform_indices = @transform_0, window_bounds = array<i64: 32, 64>}, {transform_indices = @transform_1, window_bounds = array<i64: 64, 256>}, {transform_indices = @transform_2, window_bounds = array<i64: 1, 256>}, {transform_indices = @transform_3, window_bounds = array<i64: 16, 256>}, {transform_indices = @transform_4, window_bounds = array<i64: 2, 256>}]} {
    %c0 = arith.constant 0 : index
    %c0_0 = arith.constant 0 : index
    %0 = vector.load %arg2[%c0, %c0_0] : memref<32x64xbf16, #tpu.memory_space<vmem>>, vector<32x64xbf16>
    %c0_1 = arith.constant 0 : index
    %c0_2 = arith.constant 0 : index
    %1 = vector.load %arg3[%c0_1, %c0_2] : memref<64x256xbf16, #tpu.memory_space<vmem>>, vector<64x256xbf16>
    %cst = arith.constant dense<0.000000e+00> : vector<32x256xf32>
    %2 = tpu.matmul %0, %1, %cst {dimension_numbers = #tpu.dot_dimension_numbers<[1], [0], [0], [1], [0, 0, 1, 1], [], []>} : vector<32x64xbf16>, vector<64x256xbf16>, vector<32x256xf32> -> vector<32x256xf32>
    %3 = vector.shape_cast %2 : vector<32x256xf32> to vector<2x16x256xf32>
    %c0_3 = arith.constant 0 : index
    %c0_4 = arith.constant 0 : index
    %4 = vector.load %arg5[%c0_3, %c0_4] : memref<16x256xbf16, #tpu.memory_space<vmem>>, vector<16x256xbf16>
    %5 = arith.extf %4 : vector<16x256xbf16> to vector<16x256xf32>
    %6 = vector.shape_cast %5 : vector<16x256xf32> to vector<1x16x256xf32>
    %7 = vector.broadcast %6 : vector<1x16x256xf32> to vector<2x16x256xf32>
    %8 = arith.addf %3, %7 : vector<2x16x256xf32>
    %cst_5 = arith.constant dense<0xFF800000> : vector<2x256xf32>
    %9 = vector.multi_reduction <maximumf>, %8, %cst_5 [1] : vector<2x16x256xf32> to vector<2x256xf32>
    %c0_6 = arith.constant 0 : index
    %c0_7 = arith.constant 0 : index
    %10 = vector.load %arg4[%c0_6, %c0_7] : memref<1x256xf32, #tpu.memory_space<vmem>>, vector<1x256xf32>
    %11 = vector.broadcast %10 : vector<1x256xf32> to vector<2x256xf32>
    %12 = arith.addf %9, %11 : vector<2x256xf32>
    %cst_8 = arith.constant 0.000000e+00 : f32
    %13 = vector.broadcast %cst_8 : f32 to vector<2x256xf32>
    %14 = arith.subf %13, %12 : vector<2x256xf32>
    %15 = math.exp %14 : vector<2x256xf32>
    %cst_9 = arith.constant 1.000000e+00 : f32
    %16 = vector.broadcast %cst_9 : f32 to vector<2x256xf32>
    %17 = arith.addf %16, %15 : vector<2x256xf32>
    %18 = tpu.reciprocal %17 {approx = true} : vector<2x256xf32> -> vector<2x256xf32>
    %c0_10 = arith.constant 0 : index
    %c0_11 = arith.constant 0 : index
    %19 = vector.load %arg6[%c0_10, %c0_11] : memref<2x256xf32, #tpu.memory_space<vmem>>, vector<2x256xf32>
    tpu.vector_store %arg6[%c0_10, %c0_11], %18 {strides = array<i32>} : memref<2x256xf32, #tpu.memory_space<vmem>>, vector<2x256xf32>,
    return
  }
  func.func @transform_0(%arg0: i32, %arg1: i32) -> (i32, i32) {
    %c0_i32 = arith.constant 0 : i32
    %c0_i32_0 = arith.constant 0 : i32
    return %arg0, %c0_i32 : i32, i32
  }
  func.func @transform_1(%arg0: i32, %arg1: i32) -> (i32, i32) {
    %c0_i32 = arith.constant 0 : i32
    %c0_i32_0 = arith.constant 0 : i32
    return %c0_i32, %arg1 : i32, i32
  }
  func.func @transform_2(%arg0: i32, %arg1: i32) -> (i32, i32) {
    %c0_i32 = arith.constant 0 : i32
    %c0_i32_0 = arith.constant 0 : i32
    return %c0_i32, %arg1 : i32, i32
  }
  func.func @transform_3(%arg0: i32, %arg1: i32) -> (i32, i32) {
    %c0_i32 = arith.constant 0 : i32
    %c0_i32_0 = arith.constant 0 : i32
    return %c0_i32, %arg1 : i32, i32
  }
  func.func @transform_4(%arg0: i32, %arg1: i32) -> (i32, i32) {
    %c0_i32 = arith.constant 0 : i32
    return %arg0, %arg1 : i32, i32
  }
}

</mosaic_0001>

<llo_original>
// kernel: tpu_custom_call.1
$region0: #{tpu_custom_call.1}
  #allocation0 [shape = 'u32[]', space=smem, size = 0x4, offset = 0x4, fixed_abs, tag = 'smem constant byte address 0x4 - core index']
  #allocation1 [shape = 'u32[72,128]{1,0:T(1,128)}', space=vmem, size = 0x9000, scoped, tag = 'internal scratch']
  %s0 = inlined_call_operand.hbm [shape: bf16[32,64], index: 0, kind: input, shape index: {}]
  %s1 = inlined_call_operand.hbm [shape: bf16[64,512], index: 1, kind: input, shape index: {}]
  %s2 = inlined_call_operand.hbm [shape: f32[1,512], index: 2, kind: input, shape index: {}]
  %s3 = inlined_call_operand.hbm [shape: bf16[16,512], index: 3, kind: input, shape index: {}]
  %s4 = inlined_call_operand.hbm [shape: f32[2,512], index: 4, kind: output, shape index: {}]
  %s5 = sld [smem:[#allocation0]]
  $region65: #{tpu_custom_call.1} parent=0
    _
  %s7 = ssub.s32 1, %s5
  %s8 = scalar_select 0, %s7, %s5
  $region1: #{tpu_custom_call.1} parent=0
    #allocation2 [shape = 'u8[8192]{0}', space=vmem, size = 0x2000, scoped, tag = 'input window, operand 0, single buffered']
    #allocation3 [shape = 's32[2]{0}', space=sflag, size = 0x8, scoped, tag = 'scoped memory for tpu_custom_call.1']
    #allocation4 [shape = 's32[2]{0}', space=sflag, size = 0x8, scoped, tag = 'scoped memory for tpu_custom_call.1']
    #allocation5 [shape = 'u8[65536]{0}', space=vmem, size = 0x10000, scoped, tag = 'input window, operand 1']
    #allocation6 [shape = 's32[2]{0}', space=sflag, size = 0x8, scoped, tag = 'scoped memory for tpu_custom_call.1']
    #allocation7 [shape = 'u8[2048]{0}', space=vmem, size = 0x800, scoped, tag = 'input window, operand 2']
    #allocation8 [shape = 'u8[16384]{0}', space=vmem, size = 0x4000, scoped, tag = 'input window, operand 3']
    #allocation9 [shape = 's32[2]{0}', space=sflag, size = 0x8, scoped, tag = 'scoped memory for tpu_custom_call.1']
    #allocation10 [shape = 'u8[4096]{0}', space=vmem, size = 0x1000, scoped, tag = 'output window, operand 0']
    %9 = vsyncpa [#allocation3], 0
    %10 = vsyncpa [#allocation6], 0
    %s11 = scalar_lea.sflag [#allocation6], 1
    %12 = vsyncpa %s11, 0
    %13 = vsyncpa [#allocation9], 0
    %s14 = scalar_lea.sflag [#allocation9], 1
    %15 = vsyncpa %s14, 0
    %16 = vsyncpa [#allocation4], 0
    %s17 = scalar_lea.sflag [#allocation4], 1
    %18 = vsyncpa %s17, 0
    loop: start=0, step=1, limit=4
    $region2: #{tpu_custom_call.1} parent=1 // loop_pre_header
      _
    $region3: #{tpu_custom_call.1} parent=1 // loop_header
      %s20 = sphi 0, %s24
      %p21 = scmp.ge.s32.totalorder %s20, 4
      %s27 = sphi 0, %s39
      %s28 = sphi 0, %s35
      %s29 = sphi 0, %s27
      %s30 = sphi 0, %s28
      %s31 = sphi 0, %s29
      %s32 = sphi 0, %s30
      %s42 = sphi 0, %s44
      %s45 = sphi 0, %s42
      %s46 = sphi 0, %s45
      %s62 = sphi 0, %s46
      %s68 = sphi 0, %s70
      %s71 = sphi 0, %s68
      %s72 = sphi 0, %s71
      %s88 = sphi 0, %s72
      %s94 = sphi 0, %s96
      %s97 = sphi 0, %s94
      %s98 = sphi 0, %s97
      %s114 = sphi 0, %s98
      %s120 = sphi 0, %s122
      %s123 = sphi 0, %s120
      %s124 = sphi 0, %s123
      %s140 = sphi 0, %s124
      %s148 = sphi 0, %s150
      %s151 = sphi 0, %s148
      %s152 = sphi 0, %s151
      %s168 = sphi 0, %s152
    $region4: #{tpu_custom_call.1} parent=1 // loop_header_branch
      %23 = sbr.rel (%p21) target = $region8
    $region5: #{tpu_custom_call.1} parent=1 // loop_body
      %s25 = ssub.s32 %s20, 1
      %s26 = ssub.s32 %s20, 2
      %s33 = sadd.s32 1, %s28
      %p34 = scmp.ge.s32.totalorder %s33, 2
      %s35 = scalar_select %p34, 0, %s33
      %s36 = sadd.s32 1, %s27
      %s37 = scalar_select %p34, %s36, %s27
      %p38 = scmp.ge.s32.totalorder %s37, 1
      %s39 = scalar_select %p38, 0, %s37
      %s40 = ssub.s32 %s27, %s39
      %p41 = scmp.eq.s32.totalorder %s40, 0
      %s43 = sadd.s32 %s42, 1
      %s44 = scalar_select %p41, %s42, %s43
      %p47 = pneg %p41
      %p48 = scmp.eq.s32.totalorder %s20, 1
      %p49 = por %p47, %p48
      %p50 = scmp.ne.s32.totalorder %s42, %s45
      %p51 = scmp.eq.s32.totalorder %s20, 0
      %p52 = por %p50, %p51
      %p53 = scmp.ne.s32.totalorder %s42, %s45
      %p54 = scmp.eq.s32.totalorder %s25, 1
      %p55 = por %p53, %p54
      %p56 = scmp.ne.s32.totalorder %s45, %s46
      %p57 = scmp.eq.s32.totalorder %s25, 0
      %p58 = por %p56, %p57
      %p59 = scmp.ne.s32.totalorder %s45, %s46
      %p60 = scmp.eq.s32.totalorder %s26, 1
      %p61 = por %p59, %p60
      %p63 = scmp.ne.s32.totalorder %s46, %s62
      %p64 = scmp.eq.s32.totalorder %s26, 0
      %p65 = por %p63, %p64
      %s66 = ssub.s32 %s28, %s35
      %p67 = scmp.eq.s32.totalorder %s66, 0
      %s69 = sadd.s32 %s68, 1
      %s70 = scalar_select %p67, %s68, %s69
      %p73 = pneg %p67
      %p74 = scmp.eq.s32.totalorder %s20, 1
      %p75 = por %p73, %p74
      %p76 = scmp.ne.s32.totalorder %s68, %s71
      %p77 = scmp.eq.s32.totalorder %s20, 0
      %p78 = por %p76, %p77
      %p79 = scmp.ne.s32.totalorder %s68, %s71
      %p80 = scmp.eq.s32.totalorder %s25, 1
      %p81 = por %p79, %p80
      %p82 = scmp.ne.s32.totalorder %s71, %s72
      %p83 = scmp.eq.s32.totalorder %s25, 0
      %p84 = por %p82, %p83
      %p85 = scmp.ne.s32.totalorder %s71, %s72
      %p86 = scmp.eq.s32.totalorder %s26, 1
      %p87 = por %p85, %p86
      %p89 = scmp.ne.s32.totalorder %s72, %s88
      %p90 = scmp.eq.s32.totalorder %s26, 0
      %p91 = por %p89, %p90
      %s92 = ssub.s32 %s28, %s35
      %p93 = scmp.eq.s32.totalorder %s92, 0
      %s95 = sadd.s32 %s94, 1
      %s96 = scalar_select %p93, %s94, %s95
      %p99 = pneg %p93
      %p100 = scmp.eq.s32.totalorder %s20, 1
      %p101 = por %p99, %p100
      %p102 = scmp.ne.s32.totalorder %s94, %s97
      %p103 = scmp.eq.s32.totalorder %s20, 0
      %p104 = por %p102, %p103
      %p105 = scmp.ne.s32.totalorder %s94, %s97
      %p106 = scmp.eq.s32.totalorder %s25, 1
      %p107 = por %p105, %p106
      %p108 = scmp.ne.s32.totalorder %s97, %s98
      %p109 = scmp.eq.s32.totalorder %s25, 0
      %p110 = por %p108, %p109
      %p111 = scmp.ne.s32.totalorder %s97, %s98
      %p112 = scmp.eq.s32.totalorder %s26, 1
      %p113 = por %p111, %p112
      %p115 = scmp.ne.s32.totalorder %s98, %s114
      %p116 = scmp.eq.s32.totalorder %s26, 0
      %p117 = por %p115, %p116
      %s118 = ssub.s32 %s28, %s35
      %p119 = scmp.eq.s32.totalorder %s118, 0
      %s121 = sadd.s32 %s120, 1
      %s122 = scalar_select %p119, %s120, %s121
      %p125 = pneg %p119
      %p126 = scmp.eq.s32.totalorder %s20, 1
      %p127 = por %p125, %p126
      %p128 = scmp.ne.s32.totalorder %s120, %s123
      %p129 = scmp.eq.s32.totalorder %s20, 0
      %p130 = por %p128, %p129
      %p131 = scmp.ne.s32.totalorder %s120, %s123
      %p132 = scmp.eq.s32.totalorder %s25, 1
      %p133 = por %p131, %p132
      %p134 = scmp.ne.s32.totalorder %s123, %s124
      %p135 = scmp.eq.s32.totalorder %s25, 0
      %p136 = por %p134, %p135
      %p137 = scmp.ne.s32.totalorder %s123, %s124
      %p138 = scmp.eq.s32.totalorder %s26, 1
      %p139 = por %p137, %p138
      %p141 = scmp.ne.s32.totalorder %s124, %s140
      %p142 = scmp.eq.s32.totalorder %s26, 0
      %p143 = por %p141, %p142
      %s144 = ssub.s32 %s27, %s39
      %s145 = ssub.s32 %s28, %s35
      %s146 = sor.u32 %s144, %s145
      %p147 = scmp.eq.s32.totalorder %s146, 0
      %s149 = sadd.s32 %s148, 1
      %s150 = scalar_select %p147, %s148, %s149
      %p153 = pneg %p147
      %p154 = scmp.eq.s32.totalorder %s20, 1
      %p155 = por %p153, %p154
      %p156 = scmp.ne.s32.totalorder %s148, %s151
      %p157 = scmp.eq.s32.totalorder %s20, 0
      %p158 = por %p156, %p157
      %p159 = scmp.ne.s32.totalorder %s148, %s151
      %p160 = scmp.eq.s32.totalorder %s25, 1
      %p161 = por %p159, %p160
      %p162 = scmp.ne.s32.totalorder %s151, %s152
      %p163 = scmp.eq.s32.totalorder %s25, 0
      %p164 = por %p162, %p163
      %p165 = scmp.ne.s32.totalorder %s151, %s152
      %p166 = scmp.eq.s32.totalorder %s26, 1
      %p167 = por %p165, %p166
      %p169 = scmp.ne.s32.totalorder %s152, %s168
      %p170 = scmp.eq.s32.totalorder %s26, 0
      %p171 = por %p169, %p170
      %p172 = scmp.le.s32.totalorder 1, %s20
      %p173 = scmp.lt.s32.totalorder %s20, 3
      %p174 = pnand %p172, %p173
      %p175 = pneg %p174
      // Predicated region
      $region9: #{tpu_custom_call.1} parent=5 // pred_check
        _
      $region10: #{tpu_custom_call.1} parent=5 // pred_check_branch
        %177 = sbr.rel (%p174) target = $region12
      $region11: #{tpu_custom_call.1} parent=5 // pred_region
        %s178 = ssub.s32 %s20, 1
        // Predicated region
        $region13: #{tpu_custom_call.1} parent=11 // pred_check
          %p179 = pneg %p58
        $region14: #{tpu_custom_call.1} parent=11 // pred_check_branch
          %181 = sbr.rel (%p179) target = $region16
        $region15: #{tpu_custom_call.1} parent=11 // pred_region
          %s182 = smul.u32 4, %s29
          %184 = vsyncadd [#allocation3], 0
          %s185 = smul.addr %s182, 4
          %s186 = scalar_lea.hbm %s0, %s185
          %s187 = sshll.u32 %s186, 4
          %s188 = int_to_ptr.hbm [resolvable:$true] %s187
          %s189 = sshll.u32 [#allocation2], 4
          %s190 = int_to_ptr.vmem [resolvable:$true] %s189
          %195 = dma.hbm_to_vmem [thread:$0]  %s188, 256, %s190, [#allocation3], 64, 64, 4
        $region16: #{tpu_custom_call.1} parent=11 // pred_fallthru
          _
      $region12: #{tpu_custom_call.1} parent=5 // pred_fallthru
        _
      %p196 = scmp.lt.s32.totalorder %s20, 2
      // Predicated region
      $region17: #{tpu_custom_call.1} parent=5 // pred_check
        %p197 = pneg %p196
      $region18: #{tpu_custom_call.1} parent=5 // pred_check_branch
        %199 = sbr.rel (%p197) target = $region20
      $region19: #{tpu_custom_call.1} parent=5 // pred_region
        // Predicated region
        $region21: #{tpu_custom_call.1} parent=19 // pred_check
          %p200 = pneg %p78
        $region22: #{tpu_custom_call.1} parent=19 // pred_check_branch
          %202 = sbr.rel (%p200) target = $region24
        $region23: #{tpu_custom_call.1} parent=19 // pred_region
          %s203 = sand.u32 %s20, 1
          %s204 = scalar_lea.sflag [#allocation6], %s203
          %s205 = sand.u32 %s68, 1
          %s206 = smul.addr %s205, 64
          %s207 = scalar_lea.vmem [#allocation5], %s206
          %s208 = smul.u32 2, %s28
          %210 = vsyncadd %s204, 0
          %s211 = smul.addr %s208, 4
          %s212 = scalar_lea.hbm %s1, %s211
          %s213 = sshll.u32 %s212, 4
          %s214 = int_to_ptr.hbm [resolvable:$true] %s213
          %s215 = sshll.u32 %s207, 4
          %s216 = int_to_ptr.vmem [resolvable:$true] %s215
          %221 = dma.hbm_to_vmem [thread:$0]  %s214, 1024, %s216, %s204, 256, 128, 8
        $region24: #{tpu_custom_call.1} parent=19 // pred_fallthru
          _
        // Predicated region
        $region25: #{tpu_custom_call.1} parent=19 // pred_check
          %p222 = pneg %p104
        $region26: #{tpu_custom_call.1} parent=19 // pred_check_branch
          %224 = sbr.rel (%p222) target = $region28
        $region27: #{tpu_custom_call.1} parent=19 // pred_region
          %s225 = sand.u32 %s20, 1
          %s226 = scalar_lea.sflag [#allocation6], %s225
          %s227 = sand.u32 %s94, 1
          %s228 = smul.addr %s227, 2
          %s229 = scalar_lea.vmem [#allocation7], %s228
          %s230 = smul.u32 2, %s28
          %232 = vsyncadd %s226, 0
          %s233 = scalar_lea.hbm %s2, %s230
          %s235 = sshll.u32 %s233, 4
          %s236 = int_to_ptr.hbm [resolvable:$true] %s235
          %s237 = sshll.u32 %s229, 4
          %s238 = int_to_ptr.vmem [resolvable:$true] %s237
          %240 = dma.hbm_to_vmem [thread:$0]  %s236, 32, %s238, %s226
        $region28: #{tpu_custom_call.1} parent=19 // pred_fallthru
          _
        // Predicated region
        $region29: #{tpu_custom_call.1} parent=19 // pred_check
          %p241 = pneg %p130
        $region30: #{tpu_custom_call.1} parent=19 // pred_check_branch
          %243 = sbr.rel (%p241) target = $region32
        $region31: #{tpu_custom_call.1} parent=19 // pred_region
          %s244 = sand.u32 %s120, 1
          %s245 = scalar_lea.sflag [#allocation9], %s244
          %s246 = sand.u32 %s120, 1
          %s247 = smul.addr %s246, 16
          %s248 = scalar_lea.vmem [#allocation8], %s247
          %s249 = smul.u32 2, %s28
          %251 = vsyncadd %s245, 0
          %s252 = smul.addr %s249, 4
          %s253 = scalar_lea.hbm %s3, %s252
          %s254 = sshll.u32 %s253, 4
          %s255 = int_to_ptr.hbm [resolvable:$true] %s254
          %s256 = sshll.u32 %s248, 4
          %s257 = int_to_ptr.vmem [resolvable:$true] %s256
          %262 = dma.hbm_to_vmem [thread:$0]  %s255, 256, %s257, %s245, 256, 128, 8
        $region32: #{tpu_custom_call.1} parent=19 // pred_fallthru
          _
      $region20: #{tpu_custom_call.1} parent=5 // pred_fallthru
        _
      %p263 = scmp.le.s32.totalorder 1, %s20
      %p264 = scmp.lt.s32.totalorder %s20, 3
      %p265 = pnand %p263, %p264
      %p266 = pneg %p265
      // Predicated region
      $region33: #{tpu_custom_call.1} parent=5 // pred_check
        _
      $region34: #{tpu_custom_call.1} parent=5 // pred_check_branch
        %268 = sbr.rel (%p265) target = $region36
      $region35: #{tpu_custom_call.1} parent=5 // pred_region
        %s269 = ssub.s32 %s20, 1
        // Predicated region
        $region37: #{tpu_custom_call.1} parent=35 // pred_check
          %p270 = pneg %p58
        $region38: #{tpu_custom_call.1} parent=35 // pred_check_branch
          %272 = sbr.rel (%p270) target = $region40
        $region39: #{tpu_custom_call.1} parent=35 // pred_region
          %274 = dma.done [#allocation3], 256
        $region40: #{tpu_custom_call.1} parent=35 // pred_fallthru
          _
        %s275 = sand.u32 %s25, 1
        %s276 = scalar_lea.sflag [#allocation6], %s275
        %s277 = sand.u32 %s71, 1
        %s278 = smul.addr %s277, 64
        %s279 = scalar_lea.vmem [#allocation5], %s278
        // Predicated region
        $region41: #{tpu_custom_call.1} parent=35 // pred_check
          %p280 = pneg %p84
        $region42: #{tpu_custom_call.1} parent=35 // pred_check_branch
          %282 = sbr.rel (%p280) target = $region44
        $region43: #{tpu_custom_call.1} parent=35 // pred_region
          %284 = dma.done %s276, 1024
        $region44: #{tpu_custom_call.1} parent=35 // pred_fallthru
          _
        %s285 = sand.u32 %s25, 1
        %s286 = scalar_lea.sflag [#allocation6], %s285
        %s287 = sand.u32 %s97, 1
        %s288 = smul.addr %s287, 2
        %s289 = scalar_lea.vmem [#allocation7], %s288
        // Predicated region
        $region45: #{tpu_custom_call.1} parent=35 // pred_check
          %p290 = pneg %p110
        $region46: #{tpu_custom_call.1} parent=35 // pred_check_branch
          %292 = sbr.rel (%p290) target = $region48
        $region47: #{tpu_custom_call.1} parent=35 // pred_region
          %294 = dma.done %s286, 32
        $region48: #{tpu_custom_call.1} parent=35 // pred_fallthru
          _
        %s295 = sand.u32 %s123, 1
        %s296 = scalar_lea.sflag [#allocation9], %s295
        %s297 = sand.u32 %s123, 1
        %s298 = smul.addr %s297, 16
        %s299 = scalar_lea.vmem [#allocation8], %s298
        // Predicated region
        $region49: #{tpu_custom_call.1} parent=35 // pred_check
          %p300 = pneg %p136
        $region50: #{tpu_custom_call.1} parent=35 // pred_check_branch
          %302 = sbr.rel (%p300) target = $region52
        $region51: #{tpu_custom_call.1} parent=35 // pred_region
          %304 = dma.done %s296, 256
        $region52: #{tpu_custom_call.1} parent=35 // pred_fallthru
          _
        %p305 = pneg %p58
        %p306 = pneg %p55
        %s307 = sand.u32 %s25, 1
        %s308 = scalar_lea.sflag [#allocation6], %s307
        %s309 = sand.u32 %s71, 1
        %s310 = smul.addr %s309, 64
        %s311 = scalar_lea.vmem [#allocation5], %s310
        %p312 = pneg %p84
        %p313 = pneg %p81
        %s314 = sand.u32 %s25, 1
        %s315 = scalar_lea.sflag [#allocation6], %s314
        %s316 = sand.u32 %s97, 1
        %s317 = smul.addr %s316, 2
        %s318 = scalar_lea.vmem [#allocation7], %s317
        %p319 = pneg %p110
        %p320 = pneg %p107
        %s321 = sand.u32 %s123, 1
        %s322 = scalar_lea.sflag [#allocation9], %s321
        %s323 = sand.u32 %s123, 1
        %s324 = smul.addr %s323, 16
        %s325 = scalar_lea.vmem [#allocation8], %s324
        %p326 = pneg %p136
        %p327 = pneg %p133
        %p328 = pneg %p164
        %p329 = pneg %p161
        %s330 = sand.u32 %s151, 1
        %s331 = scalar_lea.sflag [#allocation4], %s330
        %s332 = sand.u32 %s151, 1
        %s333 = smul.addr %s332, 4
        %s334 = scalar_lea.vmem [#allocation10], %s333
        %s335 = smul.u32 4, %s29
        %s336 = smul.u32 2, %s30
        %s337 = smul.u32 2, %s30
        %s338 = smul.u32 2, %s30
        %s339 = smul.u32 2, %s30
        %v341 = vld [vmem:[#allocation2] sm:$0xf]
        %v342 = vld [vmem:[#allocation2 + $0x4] sm:$0xf]
        %v343 = vld [vmem:[#allocation2 + $0x8] sm:$0xf]
        %v344 = vld [vmem:[#allocation2 + $0xc] sm:$0xf]
        %v345 = vld [vmem:[%s279] sm:$0xff]
        %v346 = vld [vmem:[%s279 + $0x8] sm:$0xff]
        %v347 = vld [vmem:[%s279 + $0x10] sm:$0xff]
        %v348 = vld [vmem:[%s279 + $0x18] sm:$0xff]
        %v349 = vld [vmem:[%s279 + $0x20] sm:$0xff]
        %v350 = vld [vmem:[%s279 + $0x28] sm:$0xff]
        %v351 = vld [vmem:[%s279 + $0x30] sm:$0xff]
        %v352 = vld [vmem:[%s279 + $0x38] sm:$0xff]
        %v357 = vunpack.c.l.b16 %v341
        %v358 = vunpack.c.l.b16 %v342
        %v359 = vunpack.c.l.b16 %v343
        %v360 = vunpack.c.l.b16 %v344
        %v361 = vpack.c.b16 %v358, %v357
        %v362 = vpack.c.b16 %v360, %v359
        %v371 = vunpack.c.l.b16 %v345
        %v372 = vunpack.c.h.b16 %v345
        %v373 = vunpack.c.l.b16 %v346
        %v374 = vunpack.c.h.b16 %v346
        %v375 = vunpack.c.l.b16 %v347
        %v376 = vunpack.c.h.b16 %v347
        %v377 = vunpack.c.l.b16 %v348
        %v378 = vunpack.c.h.b16 %v348
        %v379 = vunpack.c.l.b16 %v349
        %v380 = vunpack.c.h.b16 %v349
        %v381 = vunpack.c.l.b16 %v350
        %v382 = vunpack.c.h.b16 %v350
        %v383 = vunpack.c.l.b16 %v351
        %v384 = vunpack.c.h.b16 %v351
        %v385 = vunpack.c.l.b16 %v352
        %v386 = vunpack.c.h.b16 %v352
        %v387 = vpack.c.b16 %v373, %v371
        %v388 = vpack.c.b16 %v374, %v372
        %v389 = vpack.c.b16 %v377, %v375
        %v390 = vpack.c.b16 %v378, %v376
        %v391 = vpack.c.b16 %v381, %v379
        %v392 = vpack.c.b16 %v382, %v380
        %v393 = vpack.c.b16 %v385, %v383
        %v394 = vpack.c.b16 %v386, %v384
        %vm403 = vcmask 523264
        %v405 = vsel %vm403, %v361, 0
        %v408 = vsel %vm403, %v362, 0
        %410 = vmatpush.bf16.msra.mxu0 0
        %411 = vmatpush.bf16.msra.mxu0 0
        %412 = vmatpush.bf16.msra.mxu0 0
        %413 = vmatpush.bf16.msra.mxu0 0
        %414 = vmatpush.bf16.msra.mxu0 %v393
        %415 = vmatpush.bf16.msra.mxu0 %v391
        %416 = vmatpush.bf16.msra.mxu0 %v389
        %417 = vmatpush.bf16.msra.mxu0 %v387
        %418 = vmatmul.bf16.gmra.mxu0 %v405
        %v419 = vpop.f32.mrf.mxu0
        %v420 = vadd.f32 0.0, %v419
        %v421 = vpop.f32.mrf.mxu0
        %v422 = vadd.f32 0.0, %v421
        %423 = vmatmul.bf16.gmra.mxu0 %v408
        %v424 = vpop.f32.mrf.mxu0
        %v425 = vadd.f32 0.0, %v424
        %v426 = vpop.f32.mrf.mxu0
        %v427 = vadd.f32 0.0, %v426
        %428 = vdwg.mxu0
        %429 = vmatpush.bf16.msra.mxu0 0
        %430 = vmatpush.bf16.msra.mxu0 0
        %431 = vmatpush.bf16.msra.mxu0 0
        %432 = vmatpush.bf16.msra.mxu0 0
        %433 = vmatpush.bf16.msra.mxu0 %v394
        %434 = vmatpush.bf16.msra.mxu0 %v392
        %435 = vmatpush.bf16.msra.mxu0 %v390
        %436 = vmatpush.bf16.msra.mxu0 %v388
        %437 = vmatmul.bf16.gmra.mxu0 %v405
        %v438 = vpop.f32.mrf.mxu0
        %v439 = vadd.f32 0.0, %v438
        %v440 = vpop.f32.mrf.mxu0
        %v441 = vadd.f32 0.0, %v440
        %442 = vmatmul.bf16.gmra.mxu0 %v408
        %v443 = vpop.f32.mrf.mxu0
        %v444 = vadd.f32 0.0, %v443
        %v445 = vpop.f32.mrf.mxu0
        %v446 = vadd.f32 0.0, %v445
        %447 = vdwg.mxu0
        %v448 = vld [vmem:[%s299] sm:$0xff]
        %v449 = vld [vmem:[%s299 + $0x8] sm:$0xff]
        %v450 = vunpack.c.l.bf16 %v448
        %v451 = vunpack.c.h.bf16 %v448
        %v452 = vunpack.c.l.bf16 %v449
        %v453 = vunpack.c.h.bf16 %v449
        %v454 = vadd.f32 %v420, %v450
        %v455 = vadd.f32 %v439, %v451
        %v456 = vadd.f32 %v422, %v452
        %v457 = vadd.f32 %v441, %v453
        %v458 = vadd.f32 %v425, %v450
        %v459 = vadd.f32 %v444, %v451
        %v460 = vadd.f32 %v427, %v452
        %v461 = vadd.f32 %v446, %v453
        %v462 = vmax.f32 %v454, %v456
        %v463 = vrot.slane %v462, 4
        %v464 = vmax.f32 %v462, %v463
        %v465 = vrot.slane %v464, 2
        %v466 = vmax.f32 %v464, %v465
        %v467 = vrot.slane %v466, 1
        %v468 = vmax.f32 %v466, %v467
        %v469 = vmax.f32 %v455, %v457
        %v470 = vrot.slane %v469, 4
        %v471 = vmax.f32 %v469, %v470
        %v472 = vrot.slane %v471, 2
        %v473 = vmax.f32 %v471, %v472
        %v474 = vrot.slane %v473, 1
        %v475 = vmax.f32 %v473, %v474
        %v476 = vmax.f32 %v458, %v460
        %v477 = vrot.slane %v476, 4
        %v478 = vmax.f32 %v476, %v477
        %v479 = vrot.slane %v478, 2
        %v480 = vmax.f32 %v478, %v479
        %v481 = vrot.slane %v480, 1
        %v482 = vmax.f32 %v480, %v481
        %v483 = vmax.f32 %v459, %v461
        %v484 = vrot.slane %v483, 4
        %v485 = vmax.f32 %v483, %v484
        %v486 = vrot.slane %v485, 2
        %v487 = vmax.f32 %v485, %v486
        %v488 = vrot.slane %v487, 1
        %v489 = vmax.f32 %v487, %v488
        %v490 = vld [vmem:[%s289] sm:$0x3]
        %v492 = vperm.slane %v490, 0
        %v493 = vperm.slane %v490, 1
        %v496 = vadd.f32 %v468, %v492
        %v497 = vadd.f32 %v475, %v493
        %v498 = vadd.f32 %v482, %v492
        %v499 = vadd.f32 %v489, %v493
        %v500 = vsub.f32 0.0, %v496
        %v501 = vsub.f32 0.0, %v497
        %v502 = vsub.f32 0.0, %v498
        %v503 = vsub.f32 0.0, %v499
        %v504 = vmul.f32 %v500, 1.442695
        %v505 = vpow.pop %v504
        %v506 = vmul.f32 %v501, 1.442695
        %v507 = vpow.pop %v506
        %v508 = vmul.f32 %v502, 1.442695
        %v509 = vpow.pop %v508
        %v510 = vmul.f32 %v503, 1.442695
        %v511 = vpow.pop %v510
        %v512 = vadd.f32 %v505, 1.0
        %v513 = vadd.f32 %v507, 1.0
        %v514 = vadd.f32 %v509, 1.0
        %v515 = vadd.f32 %v511, 1.0
        %v516 = vrcp.pop %v512
        %v517 = vrcp.pop %v513
        %v518 = vrcp.pop %v514
        %v519 = vrcp.pop %v515
        %v524 = vrot.slane %v517, 6
        %v525 = vrot.slane %v519, 6
        %vm526 = vcmask 1041408
        %v527 = vsel %vm526, %v516, %v524
        %v528 = vsel %vm526, %v518, %v525
        %vm529 = vcmask 1044484
        %v530 = vsel %vm529, %v527, %v527
        %vm531 = vcmask 1046534
        %v532 = vsel %vm531, %v527, %v530
        %v533 = vrot.slane %v528, 7
        %vm534 = vcmask 1041409
        %v535 = vsel %vm534, %v533, %v532
        %vm536 = vcmask 1043459
        %v537 = vsel %vm536, %v533, %v535
        %vm538 = vcmask 1045509
        %v539 = vsel %vm538, %v533, %v537
        %vm540 = vcmask 1047559
        %v541 = vsel %vm540, %v533, %v539
        %543 = vst [vmem:[%s334] sm:$0xf] %v541
        %s544 = sand.u32 %s151, 1
        %s545 = scalar_lea.sflag [#allocation4], %s544
        %s546 = sand.u32 %s151, 1
        %s547 = smul.addr %s546, 4
        %s548 = scalar_lea.vmem [#allocation10], %s547
        // Predicated region
        $region53: #{tpu_custom_call.1} parent=35 // pred_check
          %p549 = pneg %p161
        $region54: #{tpu_custom_call.1} parent=35 // pred_check_branch
          %551 = sbr.rel (%p549) target = $region56
        $region55: #{tpu_custom_call.1} parent=35 // pred_region
          %s552 = smul.u32 2, %s30
          %554 = vsyncadd %s545, 0
          %s555 = smul.addr %s29, 4
          %s556 = sadd.s32 %s552, %s555
          %s557 = smul.addr %s556, 2
          %s558 = scalar_lea.hbm %s4, %s557
          %s560 = sshll.u32 %s548, 4
          %s561 = int_to_ptr.vmem [resolvable:$true] %s560
          %s562 = sshll.u32 %s558, 4
          %s563 = int_to_ptr.hbm [resolvable:$true] %s562
          %565 = dma.vmem_to_hbm [thread:$0]  %s561, 64, %s563, %s545
        $region56: #{tpu_custom_call.1} parent=35 // pred_fallthru
          _
      $region36: #{tpu_custom_call.1} parent=5 // pred_fallthru
        _
      %p566 = scmp.le.s32.totalorder 2, %s20
      // Predicated region
      $region57: #{tpu_custom_call.1} parent=5 // pred_check
        %p567 = pneg %p566
      $region58: #{tpu_custom_call.1} parent=5 // pred_check_branch
        %569 = sbr.rel (%p567) target = $region60
      $region59: #{tpu_custom_call.1} parent=5 // pred_region
        %s570 = ssub.s32 %s20, 2
        // Predicated region
        $region61: #{tpu_custom_call.1} parent=59 // pred_check
          %p571 = pneg %p167
        $region62: #{tpu_custom_call.1} parent=59 // pred_check_branch
          %573 = sbr.rel (%p571) target = $region64
        $region63: #{tpu_custom_call.1} parent=59 // pred_region
          %s574 = sand.u32 %s152, 1
          %s575 = scalar_lea.sflag [#allocation4], %s574
          %s576 = sand.u32 %s152, 1
          %s577 = smul.addr %s576, 4
          %s578 = scalar_lea.vmem [#allocation10], %s577
          %580 = dma.done %s575, 64
        $region64: #{tpu_custom_call.1} parent=59 // pred_fallthru
          _
      $region60: #{tpu_custom_call.1} parent=5 // pred_fallthru
        _
    $region6: #{tpu_custom_call.1} parent=1 // loop_footer
      %s24 = sadd.s32 1, %s20
    $region7: #{tpu_custom_call.1} parent=1 // loop_footer_branch
      %19 = sbr.rel target = $region3
    $region8: #{tpu_custom_call.1} parent=1 // loop_exit
      _
    %581 = vsyncpa [#allocation3], 1
    %s582 = scalar_lea.sflag [#allocation3], 1
    %583 = vsyncpa %s582, 1
    %584 = vsyncpa [#allocation6], 1
    %s585 = scalar_lea.sflag [#allocation6], 1
    %586 = vsyncpa %s585, 1
    %587 = vsyncpa [#allocation9], 1
    %s588 = scalar_lea.sflag [#allocation9], 1
    %589 = vsyncpa %s588, 1
    %590 = vsyncpa [#allocation4], 1
    %s591 = scalar_lea.sflag [#allocation4], 1
    %592 = vsyncpa %s591, 1

</llo_original>
